<compile_context>
chip_gen: v6e
topology: v6e:2x2x1
jax: 0.10.0
libtpu: 0.0.40
codegen_flags: <defaults>
</compile_context>

<pallas_src>
import functools

import jax
import jax.numpy as jnp
from jax.experimental import pallas as pl
from jax.experimental.pallas import tpu as pltpu


def _round_up(n, m):
    return ((n + m - 1) // m) * m


def dqn_kernel(x_ref, w1_ref, b1_ref, w2_ref, b2_ref, o_ref):
    # x_ref:  (TB, D_in)    f32  (cast to bf16 in-kernel, rides idle VPU slots)
    # w1_ref: (D_in, H)     bf16 (resident across grid steps)
    # b1_ref: (1, H)        f32  (resident)
    # w2_ref: (H, D_out_p)  bf16 (resident; padded to a multiple of 128 for the MXU)
    # b2_ref: (1, D_out)    f32  (resident)
    # o_ref:  (TB, D_out)   f32  (only the real columns are written back)
    d_out = o_ref.shape[-1]
    x = x_ref[...].astype(jnp.bfloat16)
    h = jnp.dot(x, w1_ref[...], preferred_element_type=jnp.float32)      # MXU, f32 acc
    h = jnp.maximum(h + b1_ref[...], 0.0)                                # f32 bias + ReLU
    y = jnp.dot(h.astype(jnp.bfloat16), w2_ref[...],
                preferred_element_type=jnp.float32)                      # MXU, f32 acc
    o_ref[...] = (y[:, :d_out] + b2_ref[...]).astype(o_ref.dtype)        # narrow store


def prepare_dqn_params(w1, b1, w2, b2):
    """One-time parameter prep (hoisted out of the per-call path).

    Weights are expected pre-transposed to (in_features, out_features), matching
    PyTorch's y = x @ W.T + b via y = x @ W + b.
    Returns (w1_bf16, b1_f32[1,H], w2_bf16 padded to [H, round_up(D_out,128)], b2_f32[1,D_out]).
    """
    H, D_out = w2.shape
    D_out_p = _round_up(D_out, 128)
    w2_p = jnp.zeros((H, D_out_p), jnp.bfloat16).at[:, :D_out].set(w2.astype(jnp.bfloat16))
    return (w1.astype(jnp.bfloat16),
            b1.reshape(1, -1).astype(jnp.float32),
            w2_p,
            b2.reshape(1, -1).astype(jnp.float32))


def _choose_tile_b(B, tile_b):
    TB = min(tile_b, _round_up(B, 8))               # never bigger than the (padded) batch
    if B > 512:
        # Keep the batch grid >= 2 steps at large B so both v7x TensorCores participate.
        TB = min(TB, max(256, _round_up(pl.cdiv(B, 2), 256)))
    return TB


def dqn_forward(x, w1_bf, b1_2d, w2_p, b2_2d, *, tile_b=2048):
    """x: (B, D_in) f32; params as returned by prepare_dqn_params."""
    B, D_in = x.shape
    H = w1_bf.shape[1]
    D_out_p = w2_p.shape[1]
    D_out = b2_2d.shape[1]

    TB = _choose_tile_b(B, tile_b)
    grid = (pl.cdiv(B, TB),)                        # ragged last block handled by Mosaic

    return pl.pallas_call(
        dqn_kernel,
        out_shape=jax.ShapeDtypeStruct((B, D_out), jnp.float32),
        grid_spec=pl.GridSpec(
            grid=grid,
            in_specs=[
                pl.BlockSpec((TB, D_in), lambda i: (i, 0)),      # x: tiled over batch
                pl.BlockSpec((D_in, H), lambda i: (0, 0)),       # w1: resident
                pl.BlockSpec((1, H), lambda i: (0, 0)),          # b1: resident
                pl.BlockSpec((H, D_out_p), lambda i: (0, 0)),    # w2 (padded): resident
                pl.BlockSpec((1, D_out), lambda i: (0, 0)),      # b2: resident
            ],
            out_specs=pl.BlockSpec((TB, D_out), lambda i: (i, 0)),
        ),
        compiler_params=pltpu.CompilerParams(
            dimension_semantics=("parallel",),                   # batch tiles independent
        ),
    )(x, w1_bf, b1_2d, w2_p, b2_2d)


if __name__ == "__main__":
    # Shapes implied by the module: input_dim=32, hidden=128 (fixed by DQN), output_dim=8.
    B, INPUT_DIM, HIDDEN, OUTPUT_DIM = 8, 32, 128, 8

    key = jax.random.PRNGKey(0)
    k_x, k_w1, k_b1, k_w2, k_b2 = jax.random.split(key, 5)

    x = jax.random.normal(k_x, (B, INPUT_DIM), dtype=jnp.float32)
    # PyTorch-style uniform init (bounds 1/sqrt(fan_in)), stored pre-transposed
    # as (in_features, out_features) so the kernel does x @ W + b.
    bound1 = 1.0 / jnp.sqrt(INPUT_DIM)
    w1 = jax.random.uniform(k_w1, (INPUT_DIM, HIDDEN), jnp.float32, -bound1, bound1)
    b1 = jax.random.uniform(k_b1, (HIDDEN,), jnp.float32, -bound1, bound1)
    bound2 = 1.0 / jnp.sqrt(HIDDEN)
    w2 = jax.random.uniform(k_w2, (HIDDEN, OUTPUT_DIM), jnp.float32, -bound2, bound2)
    b2 = jax.random.uniform(k_b2, (OUTPUT_DIM,), jnp.float32, -bound2, bound2)

    params = prepare_dqn_params(w1, b1, w2, b2)     # once, outside the per-step path
    fwd = jax.jit(functools.partial(dqn_forward, tile_b=2048))

    out = jax.block_until_ready(fwd(x, *params))
    assert out.shape == (B, OUTPUT_DIM)
    assert out.dtype == jnp.float32

    # Reference 1: same mixed precision (bf16 operands, f32 accumulate) in plain JAX.
    h_ref = jnp.maximum(
        jnp.dot(x.astype(jnp.bfloat16), w1.astype(jnp.bfloat16),
                preferred_element_type=jnp.float32) + b1, 0.0)
    ref_bf16 = jnp.dot(h_ref.astype(jnp.bfloat16), w2.astype(jnp.bfloat16),
                       preferred_element_type=jnp.float32) + b2
    assert jnp.allclose(out, ref_bf16, atol=1e-3, rtol=1e-3), "mismatch vs bf16 reference"

    # Reference 2: pure f32 reference (loose tolerance; bounds the bf16 quantization error).
    ref_f32 = jnp.maximum(x @ w1 + b1, 0.0) @ w2 + b2
    assert jnp.allclose(out, ref_f32, atol=5e-2, rtol=5e-2), "mismatch vs f32 reference"

    # Also exercise a ragged batch (B not a multiple of 8/tile) to cover the partial-block path.
    xb = jax.random.normal(k_x, (37, INPUT_DIM), dtype=jnp.float32)
    outb = jax.block_until_ready(fwd(xb, *params))
    refb = jnp.maximum(xb @ w1 + b1, 0.0) @ w2 + b2
    assert outb.shape == (37, OUTPUT_DIM)
    assert jnp.allclose(outb, refb, atol=5e-2, rtol=5e-2), "ragged-batch mismatch"

    print("KERNEL_OK")
</pallas_src>

<mosaic_0001>
module attributes {stable_mosaic.version = 11 : i64} {
  func.func @dqn_kernel(%arg0: i32, %arg1: memref<8x32xf32, #tpu.memory_space<vmem>>, %arg2: memref<32x128xbf16, #tpu.memory_space<vmem>>, %arg3: memref<1x128xf32, #tpu.memory_space<vmem>>, %arg4: memref<128x128xbf16, #tpu.memory_space<vmem>>, %arg5: memref<1x8xf32, #tpu.memory_space<vmem>>, %arg6: memref<8x8xf32, #tpu.memory_space<vmem>>) attributes {dimension_semantics = [#tpu.dimension_semantics<parallel>], iteration_bounds = array<i64: 1>, scalar_prefetch = 0 : i64, scratch_operands = 0 : i64, tpu.core_type = #tpu.core_type<tc>, window_params = [{transform_indices = @transform_0, window_bounds = array<i64: 8, 32>}, {pipeline_mode = #tpu.pipeline_mode<synchronous>, transform_indices = @transform_1, window_bounds = array<i64: 32, 128>}, {pipeline_mode = #tpu.pipeline_mode<synchronous>, transform_indices = @transform_2, window_bounds = array<i64: 1, 128>}, {pipeline_mode = #tpu.pipeline_mode<synchronous>, transform_indices = @transform_3, window_bounds = array<i64: 128, 128>}, {pipeline_mode = #tpu.pipeline_mode<synchronous>, transform_indices = @transform_4, window_bounds = array<i64: 1, 8>}, {transform_indices = @transform_5, window_bounds = array<i64: 8, 8>}]} {
    %c0 = arith.constant 0 : index
    %c0_0 = arith.constant 0 : index
    %0 = vector.load %arg1[%c0, %c0_0] : memref<8x32xf32, #tpu.memory_space<vmem>>, vector<8x32xf32>
    %1 = arith.truncf %0 : vector<8x32xf32> to vector<8x32xbf16>
    %c0_1 = arith.constant 0 : index
    %c0_2 = arith.constant 0 : index
    %2 = vector.load %arg2[%c0_1, %c0_2] : memref<32x128xbf16, #tpu.memory_space<vmem>>, vector<32x128xbf16>
    %cst = arith.constant dense<0.000000e+00> : vector<8x128xf32>
    %3 = tpu.matmul %1, %2, %cst {dimension_numbers = #tpu.dot_dimension_numbers<[1], [0], [0], [1], [0, 0, 1, 1], [], []>} : vector<8x32xbf16>, vector<32x128xbf16>, vector<8x128xf32> -> vector<8x128xf32>
    %c0_3 = arith.constant 0 : index
    %c0_4 = arith.constant 0 : index
    %4 = vector.load %arg3[%c0_3, %c0_4] : memref<1x128xf32, #tpu.memory_space<vmem>>, vector<1x128xf32>
    %5 = vector.broadcast %4 : vector<1x128xf32> to vector<8x128xf32>
    %6 = arith.addf %3, %5 : vector<8x128xf32>
    %cst_5 = arith.constant 0.000000e+00 : f32
    %7 = vector.broadcast %cst_5 : f32 to vector<8x128xf32>
    %8 = arith.maximumf %6, %7 : vector<8x128xf32>
    %9 = arith.truncf %8 : vector<8x128xf32> to vector<8x128xbf16>
    %c0_6 = arith.constant 0 : index
    %c0_7 = arith.constant 0 : index
    %10 = vector.load %arg4[%c0_6, %c0_7] : memref<128x128xbf16, #tpu.memory_space<vmem>>, vector<128x128xbf16>
    %cst_8 = arith.constant dense<0.000000e+00> : vector<8x128xf32>
    %11 = tpu.matmul %9, %10, %cst_8 {dimension_numbers = #tpu.dot_dimension_numbers<[1], [0], [0], [1], [0, 0, 1, 1], [], []>} : vector<8x128xbf16>, vector<128x128xbf16>, vector<8x128xf32> -> vector<8x128xf32>
    %12 = vector.extract_strided_slice %11 {offsets = [0, 0], sizes = [8, 8], strides = [1, 1]} : vector<8x128xf32> to vector<8x8xf32>
    %c0_9 = arith.constant 0 : index
    %c0_10 = arith.constant 0 : index
    %13 = vector.load %arg5[%c0_9, %c0_10] : memref<1x8xf32, #tpu.memory_space<vmem>>, vector<1x8xf32>
    %14 = vector.broadcast %13 : vector<1x8xf32> to vector<8x8xf32>
    %15 = arith.addf %12, %14 : vector<8x8xf32>
    %c0_11 = arith.constant 0 : index
    %c0_12 = arith.constant 0 : index
    %16 = vector.load %arg6[%c0_11, %c0_12] : memref<8x8xf32, #tpu.memory_space<vmem>>, vector<8x8xf32>
    tpu.vector_store %arg6[%c0_11, %c0_12], %15 {strides = array<i32>} : memref<8x8xf32, #tpu.memory_space<vmem>>, vector<8x8xf32>,
    return
  }
  func.func @transform_0(%arg0: i32) -> (i32, i32) {
    %c0_i32 = arith.constant 0 : i32
    %c0_i32_0 = arith.constant 0 : i32
    return %arg0, %c0_i32 : i32, i32
  }
  func.func @transform_1(%arg0: i32) -> (i32, i32) {
    %c0_i32 = arith.constant 0 : i32
    %c0_i32_0 = arith.constant 0 : i32
    %c0_i32_1 = arith.constant 0 : i32
    return %c0_i32, %c0_i32_0 : i32, i32
  }
  func.func @transform_2(%arg0: i32) -> (i32, i32) {
    %c0_i32 = arith.constant 0 : i32
    %c0_i32_0 = arith.constant 0 : i32
    %c0_i32_1 = arith.constant 0 : i32
    return %c0_i32, %c0_i32_0 : i32, i32
  }
  func.func @transform_3(%arg0: i32) -> (i32, i32) {
    %c0_i32 = arith.constant 0 : i32
    %c0_i32_0 = arith.constant 0 : i32
    %c0_i32_1 = arith.constant 0 : i32
    return %c0_i32, %c0_i32_0 : i32, i32
  }
  func.func @transform_4(%arg0: i32) -> (i32, i32) {
    %c0_i32 = arith.constant 0 : i32
    %c0_i32_0 = arith.constant 0 : i32
    %c0_i32_1 = arith.constant 0 : i32
    return %c0_i32, %c0_i32_0 : i32, i32
  }
  func.func @transform_5(%arg0: i32) -> (i32, i32) {
    %c0_i32 = arith.constant 0 : i32
    %c0_i32_0 = arith.constant 0 : i32
    return %arg0, %c0_i32 : i32, i32
  }
}

</mosaic_0001>

<llo_original>
// kernel: dqn_forward.1
$region0: #{dqn_forward.1}
  #allocation0 [shape = 'u32[]', space=smem, size = 0x4, offset = 0x4, fixed_abs, tag = 'smem constant byte address 0x4 - core index']
  #allocation1 [shape = 'u32[144,128]{1,0:T(1,128)}', space=vmem, size = 0x12000, scoped, tag = 'internal scratch']
  %s0 = inlined_call_operand.hbm [shape: f32[8,32], index: 0, kind: input, shape index: {}]
  %s1 = inlined_call_operand.hbm [shape: bf16[32,128], index: 1, kind: input, shape index: {}]
  %s2 = inlined_call_operand.vmem [shape: f32[1,128], index: 2, kind: input, shape index: {}]
  %s3 = inlined_call_operand.hbm [shape: bf16[128,128], index: 3, kind: input, shape index: {}]
  %s4 = inlined_call_operand.vmem [shape: f32[1,8], index: 4, kind: input, shape index: {}]
  %s5 = inlined_call_operand.hbm [shape: f32[8,8], index: 5, kind: output, shape index: {}]
  %s6 = sld [smem:[#allocation0]]
  $region42: #{dqn_forward.1} parent=0
    _
  %s8 = ssub.s32 1, %s6
  %s9 = scalar_select 0, %s8, %s6
  $region1: #{dqn_forward.1} parent=0
    #allocation2 [shape = 'u8[4096]{0}', space=vmem, size = 0x1000, scoped, tag = 'input window, operand 0, single buffered']
    #allocation3 [shape = 's32[1]{0}', space=sflag, size = 0x4, scoped, tag = 'scoped memory for dqn_forward.1']
    #allocation4 [shape = 's32[1]{0}', space=sflag, size = 0x4, scoped, tag = 'scoped memory for dqn_forward.1']
    #allocation5 [shape = 'u8[8192]{0}', space=vmem, size = 0x2000, scoped, tag = 'input window, operand 1, single buffered']
    #allocation6 [shape = 's32[1]{0}', space=sflag, size = 0x4, scoped, tag = 'scoped memory for dqn_forward.1']
    #allocation7 [shape = 'u8[32768]{0}', space=vmem, size = 0x8000, scoped, tag = 'input window, operand 3, single buffered']
    #allocation8 [shape = 'u8[4096]{0}', space=vmem, size = 0x1000, scoped, tag = 'output window, operand 0, single buffered']
    %10 = vsyncpa [#allocation3], 0
    %11 = vsyncpa [#allocation6], 0
    %12 = vsyncpa [#allocation4], 0
    // Predicated region
    $region2: #{dqn_forward.1} parent=1 // pred_check
      _
    $region3: #{dqn_forward.1} parent=1 // pred_check_branch
      %14 = sbr.rel (0) target = $region5
    $region4: #{dqn_forward.1} parent=1 // pred_region
      %s16 = ssub.s32 128, 128
      %17 = vsyncadd [#allocation3], %s16
      %s19 = sshll.u32 [#allocation2], 4
      %s20 = int_to_ptr.vmem [resolvable:$true] %s19
      %22 = dma.hbm_to_vmem [thread:$0]  %s0, 128, %s20, [#allocation3]
    $region5: #{dqn_forward.1} parent=1 // pred_fallthru
      _
    // Predicated region
    $region6: #{dqn_forward.1} parent=1 // pred_check
      _
    $region7: #{dqn_forward.1} parent=1 // pred_check_branch
      %24 = sbr.rel (0) target = $region9
    $region8: #{dqn_forward.1} parent=1 // pred_region
      %s26 = ssub.s32 256, 256
      %27 = vsyncadd [#allocation6], %s26
      %s28 = sshll.u32 [#allocation5], 4
      %s29 = int_to_ptr.vmem [resolvable:$true] %s28
      %34 = dma.hbm_to_vmem [thread:$0]  %s1, 256, %s29, [#allocation6], 64, 64, 4
    $region9: #{dqn_forward.1} parent=1 // pred_fallthru
      _
    // Predicated region
    $region10: #{dqn_forward.1} parent=1 // pred_check
      _
    $region11: #{dqn_forward.1} parent=1 // pred_check_branch
      %36 = sbr.rel (0) target = $region13
    $region12: #{dqn_forward.1} parent=1 // pred_region
      _
    $region13: #{dqn_forward.1} parent=1 // pred_fallthru
      _
    // Predicated region
    $region14: #{dqn_forward.1} parent=1 // pred_check
      _
    $region15: #{dqn_forward.1} parent=1 // pred_check_branch
      %38 = sbr.rel (0) target = $region17
    $region16: #{dqn_forward.1} parent=1 // pred_region
      %s40 = ssub.s32 1024, 1024
      %41 = vsyncadd [#allocation6], %s40
      %s42 = sshll.u32 [#allocation7], 4
      %s43 = int_to_ptr.vmem [resolvable:$true] %s42
      %48 = dma.hbm_to_vmem [thread:$0]  %s3, 1024, %s43, [#allocation6], 64, 64, 4
    $region17: #{dqn_forward.1} parent=1 // pred_fallthru
      _
    // Predicated region
    $region18: #{dqn_forward.1} parent=1 // pred_check
      _
    $region19: #{dqn_forward.1} parent=1 // pred_check_branch
      %50 = sbr.rel (0) target = $region21
    $region20: #{dqn_forward.1} parent=1 // pred_region
      _
    $region21: #{dqn_forward.1} parent=1 // pred_fallthru
      _
    // Predicated region
    $region22: #{dqn_forward.1} parent=1 // pred_check
      _
    $region23: #{dqn_forward.1} parent=1 // pred_check_branch
      %52 = sbr.rel (0) target = $region25
    $region24: #{dqn_forward.1} parent=1 // pred_region
      %53 = dma.done [#allocation3], 128
    $region25: #{dqn_forward.1} parent=1 // pred_fallthru
      _
    // Predicated region
    $region26: #{dqn_forward.1} parent=1 // pred_check
      _
    $region27: #{dqn_forward.1} parent=1 // pred_check_branch
      %55 = sbr.rel (0) target = $region29
    $region28: #{dqn_forward.1} parent=1 // pred_region
      %56 = dma.done [#allocation6], 256
    $region29: #{dqn_forward.1} parent=1 // pred_fallthru
      _
    // Predicated region
    $region30: #{dqn_forward.1} parent=1 // pred_check
      _
    $region31: #{dqn_forward.1} parent=1 // pred_check_branch
      %58 = sbr.rel (0) target = $region33
    $region32: #{dqn_forward.1} parent=1 // pred_region
      %59 = dma.done [#allocation6], 1024
    $region33: #{dqn_forward.1} parent=1 // pred_fallthru
      _
    %v61 = vld [vmem:[#allocation2] sm:$0xff]
    %v62 = vpack.c.bf16 %v61, %v61
    %v63 = vld [vmem:[#allocation5] sm:$0xf]
    %v64 = vld [vmem:[#allocation5 + $0x4] sm:$0xf]
    %v65 = vld [vmem:[#allocation5 + $0x8] sm:$0xf]
    %v66 = vld [vmem:[#allocation5 + $0xc] sm:$0xf]
    %v67 = vld [vmem:[%s2] sm:$0x1]
    %v69 = vlaneseq
    %v70 = vshrl.u32 %v69, 7
    %v71 = vsub.s32 0, %v70
    %v72 = vrot.slane %v67, %v71
    %v78 = vunpack.c.l.b16 %v63
    %v79 = vunpack.c.l.b16 %v64
    %v80 = vunpack.c.l.b16 %v65
    %v81 = vunpack.c.l.b16 %v66
    %v82 = vpack.c.b16 %v79, %v78
    %v83 = vpack.c.b16 %v81, %v80
    %vm86 = vcmask 261120
    %v88 = vsel %vm86, %v62, 0
    %90 = vmatprep.subr.bf16.mxu0 0
    %91 = vmatpush1.bf16.msra.mxu0 0
    %92 = vmatprep.subr.bf16.mxu0 0
    %93 = vmatpush1.bf16.msra.mxu0 0
    %94 = vmatprep.subr.bf16.mxu0 0
    %95 = vmatpush1.bf16.msra.mxu0 0
    %96 = vmatprep.subr.bf16.mxu0 0
    %97 = vmatpush1.bf16.msra.mxu0 0
    %98 = vmatprep.subr.bf16.mxu0 0
    %99 = vmatpush1.bf16.msra.mxu0 0
    %100 = vmatprep.subr.bf16.mxu0 0
    %101 = vmatpush1.bf16.msra.mxu0 0
    %102 = vmatprep.subr.bf16.mxu0 0
    %103 = vmatpush1.bf16.msra.mxu0 %v83
    %104 = vmatprep.subr.bf16.mxu0 0
    %105 = vmatpush1.bf16.msra.mxu0 %v82
    %106 = vmatprep.subr.bf16.mxu0 0
    %107 = vmatpush2.bf16.msra.mxu0 0
    %108 = vmatprep.subr.bf16.mxu0 0
    %109 = vmatpush2.bf16.msra.mxu0 0
    %110 = vmatprep.subr.bf16.mxu0 0
    %111 = vmatpush2.bf16.msra.mxu0 0
    %112 = vmatprep.subr.bf16.mxu0 0
    %113 = vmatpush2.bf16.msra.mxu0 0
    %114 = vmatprep.subr.bf16.mxu0 0
    %115 = vmatpush2.bf16.msra.mxu0 0
    %116 = vmatprep.subr.bf16.mxu0 0
    %117 = vmatpush2.bf16.msra.mxu0 0
    %118 = vmatprep.subr.bf16.mxu0 0
    %119 = vmatpush2.bf16.msra.mxu0 0
    %120 = vmatprep.subr.bf16.mxu0 0
    %121 = vmatpush2.bf16.msra.mxu0 0
    %122 = vmatprep.mubr.bf16.mxu0 0
    %123 = vmatmul.mubr.bf16.gmra.mxu0 %v88
    %v124 = vpop.f32.mrf.mxu0
    %v125 = vadd.f32 %v72, %v124
    %v126 = vpop.f32.mrf.mxu0
    %v127 = vpop.f32.mrf.mxu0
    %v128 = vpop.f32.mrf.mxu0
    %129 = vdwg.mxu0
    %v130 = vmax.f32 %v125, 0.0
    %v131 = vpack.c.bf16 %v130, %v130
    %v132 = vld [vmem:[#allocation7] sm:$0xf]
    %v133 = vld [vmem:[#allocation7 + $0x4] sm:$0xf]
    %v134 = vld [vmem:[#allocation7 + $0x8] sm:$0xf]
    %v135 = vld [vmem:[#allocation7 + $0xc] sm:$0xf]
    %v136 = vld [vmem:[#allocation7 + $0x10] sm:$0xf]
    %v137 = vld [vmem:[#allocation7 + $0x14] sm:$0xf]
    %v138 = vld [vmem:[#allocation7 + $0x18] sm:$0xf]
    %v139 = vld [vmem:[#allocation7 + $0x1c] sm:$0xf]
    %v140 = vld [vmem:[#allocation7 + $0x20] sm:$0xf]
    %v141 = vld [vmem:[#allocation7 + $0x24] sm:$0xf]
    %v142 = vld [vmem:[#allocation7 + $0x28] sm:$0xf]
    %v143 = vld [vmem:[#allocation7 + $0x2c] sm:$0xf]
    %v144 = vld [vmem:[#allocation7 + $0x30] sm:$0xf]
    %v145 = vld [vmem:[#allocation7 + $0x34] sm:$0xf]
    %v146 = vld [vmem:[#allocation7 + $0x38] sm:$0xf]
    %v147 = vld [vmem:[#allocation7 + $0x3c] sm:$0xf]
    %v164 = vunpack.c.l.b16 %v132
    %v165 = vunpack.c.l.b16 %v133
    %v166 = vunpack.c.l.b16 %v134
    %v167 = vunpack.c.l.b16 %v135
    %v168 = vunpack.c.l.b16 %v136
    %v169 = vunpack.c.l.b16 %v137
    %v170 = vunpack.c.l.b16 %v138
    %v171 = vunpack.c.l.b16 %v139
    %v172 = vunpack.c.l.b16 %v140
    %v173 = vunpack.c.l.b16 %v141
    %v174 = vunpack.c.l.b16 %v142
    %v175 = vunpack.c.l.b16 %v143
    %v176 = vunpack.c.l.b16 %v144
    %v177 = vunpack.c.l.b16 %v145
    %v178 = vunpack.c.l.b16 %v146
    %v179 = vunpack.c.l.b16 %v147
    %v180 = vpack.c.b16 %v165, %v164
    %v181 = vpack.c.b16 %v167, %v166
    %v182 = vpack.c.b16 %v169, %v168
    %v183 = vpack.c.b16 %v171, %v170
    %v184 = vpack.c.b16 %v173, %v172
    %v185 = vpack.c.b16 %v175, %v174
    %v186 = vpack.c.b16 %v177, %v176
    %v187 = vpack.c.b16 %v179, %v178
    %196 = vmatprep.subr.bf16.mxu0 0
    %197 = vmatpush1.bf16.msra.mxu0 %v187
    %198 = vmatprep.subr.bf16.mxu0 0
    %199 = vmatpush1.bf16.msra.mxu0 %v186
    %200 = vmatprep.subr.bf16.mxu0 0
    %201 = vmatpush1.bf16.msra.mxu0 %v185
    %202 = vmatprep.subr.bf16.mxu0 0
    %203 = vmatpush1.bf16.msra.mxu0 %v184
    %204 = vmatprep.subr.bf16.mxu0 0
    %205 = vmatpush1.bf16.msra.mxu0 %v183
    %206 = vmatprep.subr.bf16.mxu0 0
    %207 = vmatpush1.bf16.msra.mxu0 %v182
    %208 = vmatprep.subr.bf16.mxu0 0
    %209 = vmatpush1.bf16.msra.mxu0 %v181
    %210 = vmatprep.subr.bf16.mxu0 0
    %211 = vmatpush1.bf16.msra.mxu0 %v180
    %212 = vmatprep.subr.bf16.mxu0 0
    %213 = vmatpush2.bf16.msra.mxu0 0
    %214 = vmatprep.subr.bf16.mxu0 0
    %215 = vmatpush2.bf16.msra.mxu0 0
    %216 = vmatprep.subr.bf16.mxu0 0
    %217 = vmatpush2.bf16.msra.mxu0 0
    %218 = vmatprep.subr.bf16.mxu0 0
    %219 = vmatpush2.bf16.msra.mxu0 0
    %220 = vmatprep.subr.bf16.mxu0 0
    %221 = vmatpush2.bf16.msra.mxu0 0
    %222 = vmatprep.subr.bf16.mxu0 0
    %223 = vmatpush2.bf16.msra.mxu0 0
    %224 = vmatprep.subr.bf16.mxu0 0
    %225 = vmatpush2.bf16.msra.mxu0 0
    %226 = vmatprep.subr.bf16.mxu0 0
    %227 = vmatpush2.bf16.msra.mxu0 0
    %228 = vmatprep.mubr.bf16.mxu0 0
    %229 = vmatmul.mubr.bf16.gmra.mxu0 %v131
    %v230 = vpop.f32.mrf.mxu0
    %v231 = vadd.f32 0.0, %v230
    %v232 = vpop.f32.mrf.mxu0
    %v233 = vpop.f32.mrf.mxu0
    %v234 = vpop.f32.mrf.mxu0
    %235 = vdwg.mxu0
    %v236 = vld [vmem:[%s4] sm:$0x1]
    %v238 = vlaneseq
    %v239 = vshrl.u32 %v238, 7
    %v240 = vsub.s32 0, %v239
    %v241 = vrot.slane %v236, %v240
    %v243 = vadd.f32 %v231, %v241
    %vm244 = vcmask 64512
    %245 = vst.msk [vmem:[#allocation8] sm:$0xff] %vm244, %v243
    // Predicated region
    $region34: #{dqn_forward.1} parent=1 // pred_check
      _
    $region35: #{dqn_forward.1} parent=1 // pred_check_branch
      %247 = sbr.rel (0) target = $region37
    $region36: #{dqn_forward.1} parent=1 // pred_region
      %s249 = ssub.s32 128, 128
      %250 = vsyncadd [#allocation4], %s249
      %s252 = sshll.u32 [#allocation8], 4
      %s253 = int_to_ptr.vmem [resolvable:$true] %s252
      %255 = dma.vmem_to_hbm [thread:$0]  %s253, 128, %s5, [#allocation4]
    $region37: #{dqn_forward.1} parent=1 // pred_fallthru
      _
    // Predicated region
    $region38: #{dqn_forward.1} parent=1 // pred_check
      _
    $region39: #{dqn_forward.1} parent=1 // pred_check_branch
      %257 = sbr.rel (0) target = $region41
    $region40: #{dqn_forward.1} parent=1 // pred_region
      %258 = dma.done [#allocation4], 128
    $region41: #{dqn_forward.1} parent=1 // pred_fallthru
      _
    %259 = vsyncpa [#allocation3], 1
    %260 = vsyncpa [#allocation6], 1
    %261 = vsyncpa [#allocation4], 1

</llo_original>
